<compile_context>
chip_gen: v6e
topology: v6e:2x2x1
jax: 0.10.0
libtpu: 0.0.40
codegen_flags: <defaults>
</compile_context>

<pallas_src>
import functools

import jax
import jax.numpy as jnp
from jax.experimental import pallas as pl
from jax.experimental.pallas import tpu as pltpu


TILE = 128          # query tile (lanes) == key tile (sublanes)
_PAD_COORD = 1e10   # padded points sit far outside any real ball


# ----------------------------------------------------------------------------
# Pallas kernel: ball_query(new_xyz=xyz, xyz=xyz, radius, nsample=1)
# ----------------------------------------------------------------------------
def _ball_query_kernel(r2, sentinel, qt_ref, kp_ref, out_ref, acc_ref):
    qi = pl.program_id(1)
    ki = pl.program_id(2)

    @pl.when(ki == 0)
    def _init():
        acc_ref[...] = jnp.full_like(acc_ref, sentinel)

    # Triangular pruning: query j always has d^2(j,j) = 0 < r^2, so its answer index
    # is <= j.  Key tiles starting beyond this query tile can never win the min.
    @pl.when(ki <= qi)
    def _compute():
        qt = qt_ref[0]                      # (3, TILE)  coords-major queries (lane axis = query)
        kp = kp_ref[0]                      # (TILE, 3)  points-major keys (sublane axis = key)
        dx = kp[:, 0:1] - qt[0:1, :]        # (TILE, TILE) via sublane/lane broadcasts
        dy = kp[:, 1:2] - qt[1:2, :]
        dz = kp[:, 2:3] - qt[2:3, :]
        d2 = dx * dx + dy * dy + dz * dz    # pure VPU work
        k_ids = jax.lax.broadcasted_iota(jnp.int32, (TILE, 1), 0) + ki * TILE
        cand = jnp.where(d2 < r2, jnp.broadcast_to(k_ids, d2.shape), sentinel)
        acc_ref[...] = jnp.minimum(acc_ref[...],
                                   jnp.min(cand, axis=0, keepdims=True))   # (1, TILE)

    @pl.when(ki == pl.num_programs(2) - 1)
    def _write():
        out_ref[...] = acc_ref[...][None]   # (1, 1, TILE) lane-dense store


def ball_query_pallas(xyz, radius, nsample):
    """pnt2_ops.ball_query(xyz, xyz, radius, nsample) for nsample == 1.

    xyz: (B, N, 3) f32.  Returns (B, N, 1) int32: smallest k with d^2 < radius^2
    (always exists for query==points since d(j,j)=0).
    """
    assert nsample == 1  # TODO(synk): nsample>1 needs the CUDA op's slot-filling semantics
    B, N, C = xyz.shape
    assert C == 3
    r2 = float(radius) * float(radius)
    sentinel = N                                   # "no hit" — never triggers here

    n_pad = ((N + TILE - 1) // TILE) * TILE
    xyz_pm = jnp.pad(xyz.astype(jnp.float32),
                     ((0, 0), (0, n_pad - N), (0, 0)),
                     constant_values=_PAD_COORD)   # (B, n_pad, 3) points-major (keys)
    xyz_cm = jnp.transpose(xyz_pm, (0, 2, 1))      # (B, 3, n_pad) coords-major (queries)

    nq = n_pad // TILE
    nk = n_pad // TILE

    out = pl.pallas_call(
        functools.partial(_ball_query_kernel, r2, sentinel),
        out_shape=jax.ShapeDtypeStruct((B, 1, n_pad), jnp.int32),
        grid=(B, nq, nk),
        in_specs=[
            # queries: coords-major, block index constant across ki (re-fetch skipped)
            pl.BlockSpec((1, 3, TILE), lambda b, qi, ki: (b, 0, qi)),
            # keys: points-major; clamp to the pruned triangle so skipped ki steps
            # reuse the previous tile and issue no new DMA
            pl.BlockSpec((1, TILE, 3), lambda b, qi, ki: (b, jnp.minimum(ki, qi), 0)),
        ],
        out_specs=pl.BlockSpec((1, 1, TILE), lambda b, qi, ki: (b, 0, qi)),
        scratch_shapes=[pltpu.VMEM((1, TILE), jnp.int32)],
        compiler_params=pltpu.CompilerParams(
            dimension_semantics=("parallel", "parallel", "arbitrary"),
            vmem_limit_bytes=32 * 1024 * 1024,     # well under v7x's 64 MiB physical VMEM
        ),
    )(xyz_cm, xyz_pm)

    return out[:, 0, :N][..., None]                # (B, N, 1) int32


# ----------------------------------------------------------------------------
# Plain-JAX glue mirroring the (dead-code) intermediates of the torch forward.
# Under jit with only `b` returned they are DCE'd.
# ----------------------------------------------------------------------------
def farthest_point_sampling(xyz, npoint):
    """pnt2_ops.sampling: FPS starting from index 0. xyz (B,N,3) -> (B,npoint) i32."""
    B, N, _ = xyz.shape

    def body(i, state):
        idxs, dists, last = state
        last_pt = jnp.take_along_axis(xyz, last[:, None, None], axis=1)   # (B,1,3)
        d = jnp.sum((xyz - last_pt) ** 2, axis=-1)                        # (B,N)
        dists = jnp.minimum(dists, d)
        nxt = jnp.argmax(dists, axis=-1).astype(jnp.int32)                # (B,)
        idxs = idxs.at[:, i].set(nxt)
        return idxs, dists, nxt

    idxs0 = jnp.zeros((B, npoint), jnp.int32)
    dists0 = jnp.full((B, N), 1e10, jnp.float32)
    last0 = jnp.zeros((B,), jnp.int32)
    idxs, _, _ = jax.lax.fori_loop(1, npoint, body, (idxs0, dists0, last0))
    return idxs


def gather_points(p_t, idx):
    """pnt2_ops.gather_points: p_t (B,C,N), idx (B,S) -> (B,C,S)."""
    B, C, _ = p_t.shape
    S = idx.shape[1]
    gidx = jnp.broadcast_to(idx[:, None, :], (B, C, S))
    return jnp.take_along_axis(p_t, gidx, axis=2)


@functools.partial(jax.jit, static_argnums=(1, 2, 3))
def _nmd_forward(p, r, s, i):
    xyz = p[:, :, 0:3]                             # (B, N, 3)
    samp = farthest_point_sampling(xyz, s)         # dead code (mirrors torch), DCE'd
    p_t = jnp.transpose(p, (0, 2, 1))              # (B, C, N)
    _gp = gather_points(p_t, samp)                 # dead code (mirrors torch), DCE'd
    # TODO(synk): torch's `c = gather_points(xyz, s)` feeds a (B,N,3) tensor to a
    # channels-first CUDA op (indices OOB); not reproduced.
    return ball_query_pallas(xyz, r, i)            # (B, N, 1) int32 — the returned value


class NMD:
    def __init__(self):
        self.r = 1.0
        self.s = 5
        self.i = 1

    def forward(self, p):
        return _nmd_forward(p, self.r, self.s, self.i)


if __name__ == "__main__":
    key = jax.random.PRNGKey(0)
    B, N, C = 2, 16, 6
    p = jax.random.normal(key, (B, N, C), dtype=jnp.float32)

    model = NMD()
    b = model.forward(p)
    b = jax.block_until_ready(b)

    # Reference check in plain JAX.
    xyz = p[:, :, 0:3]
    diff = xyz[:, :, None, :] - xyz[:, None, :, :]
    d2 = jnp.sum(diff * diff, axis=-1)                                   # (B,N,N)
    k_ids = jnp.broadcast_to(jnp.arange(N, dtype=jnp.int32), (B, N, N))
    ref = jnp.min(jnp.where(d2 < model.r * model.r, k_ids, N), axis=-1)[:, :, None]
    assert b.shape == (B, N, 1) and b.dtype == jnp.int32
    assert jnp.array_equal(b, ref)

    print("KERNEL_OK")
</pallas_src>

<mosaic_0001>
module attributes {stable_mosaic.version = 11 : i64} {
  func.func @_ball_query_kernel(%arg0: i32, %arg1: i32, %arg2: i32, %arg3: memref<1x3x128xf32, #tpu.memory_space<vmem>>, %arg4: memref<1x128x3xf32, #tpu.memory_space<vmem>>, %arg5: memref<1x1x128xi32, #tpu.memory_space<vmem>>, %arg6: memref<1x128xi32, #tpu.memory_space<vmem>>) attributes {dimension_semantics = [#tpu.dimension_semantics<parallel>, #tpu.dimension_semantics<parallel>, #tpu.dimension_semantics<arbitrary>], iteration_bounds = array<i64: 2, 1, 1>, scalar_prefetch = 0 : i64, scratch_operands = 1 : i64, tpu.core_type = #tpu.core_type<tc>, window_params = [{transform_indices = @transform_0, window_bounds = array<i64: 1, 3, 128>}, {transform_indices = @transform_1, window_bounds = array<i64: 1, 128, 3>}, {transform_indices = @transform_2, window_bounds = array<i64: 1, 1, 128>}]} {
    %c0_i32 = arith.constant 0 : i32
    %0 = arith.cmpi eq, %arg2, %c0_i32 : i32
    %1 = arith.extui %0 : i1 to i32
    %c0_i32_0 = arith.constant 0 : i32
    %2 = arith.cmpi ne, %1, %c0_i32_0 : i32
    scf.if %2 {
      %c16_i32 = arith.constant 16 : i32
      %9 = vector.broadcast %c16_i32 : i32 to vector<1x128xi32>
      %c0 = arith.constant 0 : index
      %c0_4 = arith.constant 0 : index
      %10 = vector.load %arg6[%c0, %c0_4] : memref<1x128xi32, #tpu.memory_space<vmem>>, vector<1x128xi32>
      tpu.vector_store %arg6[%c0, %c0_4], %9 {strides = array<i32>} : memref<1x128xi32, #tpu.memory_space<vmem>>, vector<1x128xi32>,
    } else {
    }
    %3 = arith.cmpi sle, %arg2, %arg1 : i32
    %4 = arith.extui %3 : i1 to i32
    %c0_i32_1 = arith.constant 0 : i32
    %5 = arith.cmpi ne, %4, %c0_i32_1 : i32
    scf.if %5 {
      %c0 = arith.constant 0 : index
      %c0_4 = arith.constant 0 : index
      %c0_5 = arith.constant 0 : index
      %9 = vector.load %arg3[%c0, %c0_4, %c0_5] : memref<1x3x128xf32, #tpu.memory_space<vmem>>, vector<1x3x128xf32>
      %10 = vector.shape_cast %9 : vector<1x3x128xf32> to vector<3x128xf32>
      %c0_6 = arith.constant 0 : index
      %c0_7 = arith.constant 0 : index
      %c0_8 = arith.constant 0 : index
      %11 = vector.load %arg4[%c0_6, %c0_7, %c0_8] : memref<1x128x3xf32, #tpu.memory_space<vmem>>, vector<1x128x3xf32>
      %12 = vector.shape_cast %11 : vector<1x128x3xf32> to vector<128x3xf32>
      %13 = vector.extract_strided_slice %12 {offsets = [0, 0], sizes = [128, 1], strides = [1, 1]} : vector<128x3xf32> to vector<128x1xf32>
      %14 = vector.extract_strided_slice %10 {offsets = [0, 0], sizes = [1, 128], strides = [1, 1]} : vector<3x128xf32> to vector<1x128xf32>
      %15 = vector.broadcast %13 : vector<128x1xf32> to vector<128x128xf32>
      %16 = vector.broadcast %14 : vector<1x128xf32> to vector<128x128xf32>
      %17 = arith.subf %15, %16 : vector<128x128xf32>
      %18 = vector.extract_strided_slice %12 {offsets = [0, 1], sizes = [128, 1], strides = [1, 1]} : vector<128x3xf32> to vector<128x1xf32>
      %19 = vector.extract_strided_slice %10 {offsets = [1, 0], sizes = [1, 128], strides = [1, 1]} : vector<3x128xf32> to vector<1x128xf32>
      %20 = vector.broadcast %18 : vector<128x1xf32> to vector<128x128xf32>
      %21 = vector.broadcast %19 : vector<1x128xf32> to vector<128x128xf32>
      %22 = arith.subf %20, %21 : vector<128x128xf32>
      %23 = vector.extract_strided_slice %12 {offsets = [0, 2], sizes = [128, 1], strides = [1, 1]} : vector<128x3xf32> to vector<128x1xf32>
      %24 = vector.extract_strided_slice %10 {offsets = [2, 0], sizes = [1, 128], strides = [1, 1]} : vector<3x128xf32> to vector<1x128xf32>
      %25 = vector.broadcast %23 : vector<128x1xf32> to vector<128x128xf32>
      %26 = vector.broadcast %24 : vector<1x128xf32> to vector<128x128xf32>
      %27 = arith.subf %25, %26 : vector<128x128xf32>
      %28 = arith.mulf %17, %17 : vector<128x128xf32>
      %29 = arith.mulf %22, %22 : vector<128x128xf32>
      %30 = arith.addf %28, %29 : vector<128x128xf32>
      %31 = arith.mulf %27, %27 : vector<128x128xf32>
      %32 = arith.addf %30, %31 : vector<128x128xf32>
      %33 = tpu.iota {dimensions = array<i32: 0>} : vector<128x1xi32>
      %c128_i32 = arith.constant 128 : i32
      %34 = arith.muli %arg2, %c128_i32 : i32
      %35 = vector.broadcast %34 : i32 to vector<128x1xi32>
      %36 = arith.addi %33, %35 : vector<128x1xi32>
      %cst = arith.constant 1.000000e+00 : f32
      %37 = vector.broadcast %cst : f32 to vector<128x128xf32>
      %38 = arith.cmpf olt, %32, %37 : vector<128x128xf32>
      %39 = vector.shape_cast %36 : vector<128x1xi32> to vector<128x1xi32>
      %40 = vector.broadcast %39 : vector<128x1xi32> to vector<128x128xi32>
      %c16_i32 = arith.constant 16 : i32
      %41 = vector.broadcast %c16_i32 : i32 to vector<128x128xi32>
      %42 = arith.select %38, %40, %41 : vector<128x128xi1>, vector<128x128xi32>
      %c0_9 = arith.constant 0 : index
      %c0_10 = arith.constant 0 : index
      %43 = vector.load %arg6[%c0_9, %c0_10] : memref<1x128xi32, #tpu.memory_space<vmem>>, vector<1x128xi32>
      %cst_11 = arith.constant dense<2147483647> : vector<128xi32>
      %44 = vector.multi_reduction <minsi>, %42, %cst_11 [0] : vector<128x128xi32> to vector<128xi32>
      %45 = vector.shape_cast %44 : vector<128xi32> to vector<1x128xi32>
      %46 = arith.minsi %43, %45 : vector<1x128xi32>
      %c0_12 = arith.constant 0 : index
      %c0_13 = arith.constant 0 : index
      %47 = vector.load %arg6[%c0_12, %c0_13] : memref<1x128xi32, #tpu.memory_space<vmem>>, vector<1x128xi32>
      tpu.vector_store %arg6[%c0_12, %c0_13], %46 {strides = array<i32>} : memref<1x128xi32, #tpu.memory_space<vmem>>, vector<1x128xi32>,
    } else {
    }
    %c0_i32_2 = arith.constant 0 : i32
    %6 = arith.cmpi eq, %arg2, %c0_i32_2 : i32
    %7 = arith.extui %6 : i1 to i32
    %c0_i32_3 = arith.constant 0 : i32
    %8 = arith.cmpi ne, %7, %c0_i32_3 : i32
    scf.if %8 {
      %c0 = arith.constant 0 : index
      %c0_4 = arith.constant 0 : index
      %9 = vector.load %arg6[%c0, %c0_4] : memref<1x128xi32, #tpu.memory_space<vmem>>, vector<1x128xi32>
      %10 = vector.shape_cast %9 : vector<1x128xi32> to vector<1x1x128xi32>
      %c0_5 = arith.constant 0 : index
      %c0_6 = arith.constant 0 : index
      %c0_7 = arith.constant 0 : index
      %11 = vector.load %arg5[%c0_5, %c0_6, %c0_7] : memref<1x1x128xi32, #tpu.memory_space<vmem>>, vector<1x1x128xi32>
      tpu.vector_store %arg5[%c0_5, %c0_6, %c0_7], %10 {strides = array<i32>} : memref<1x1x128xi32, #tpu.memory_space<vmem>>, vector<1x1x128xi32>,
    } else {
    }
    return
  }
  func.func @transform_0(%arg0: i32, %arg1: i32, %arg2: i32) -> (i32, i32, i32) {
    %c0_i32 = arith.constant 0 : i32
    %c0_i32_0 = arith.constant 0 : i32
    return %arg0, %c0_i32, %arg1 : i32, i32, i32
  }
  func.func @transform_1(%arg0: i32, %arg1: i32, %arg2: i32) -> (i32, i32, i32) {
    %0 = arith.minsi %arg2, %arg1 : i32
    %c0_i32 = arith.constant 0 : i32
    %c0_i32_0 = arith.constant 0 : i32
    return %arg0, %0, %c0_i32 : i32, i32, i32
  }
  func.func @transform_2(%arg0: i32, %arg1: i32, %arg2: i32) -> (i32, i32, i32) {
    %c0_i32 = arith.constant 0 : i32
    %c0_i32_0 = arith.constant 0 : i32
    return %arg0, %c0_i32, %arg1 : i32, i32, i32
  }
}

</mosaic_0001>

<llo_original>
// kernel: _nmd_forward.1
$region0: #{_nmd_forward.1}
  #allocation0 [shape = 'u32[]', space=smem, size = 0x4, offset = 0x4, fixed_abs, tag = 'smem constant byte address 0x4 - core index']
  #allocation1 [shape = 'u32[144,128]{1,0:T(1,128)}', space=vmem, size = 0x12000, scoped, tag = 'internal scratch']
  #allocation2 [shape = 's32[1,128]{1,0:T(1,128)}', space=vmem, size = 0x200, scoped, tag = 'scratch operand']
  %s0 = inlined_call_operand.vmem [shape: f32[2,3,128], index: 0, kind: input, shape index: {}]
  %s1 = inlined_call_operand.vmem [shape: f32[2,128,3], index: 1, kind: input, shape index: {}]
  %s2 = inlined_call_operand.vmem [shape: s32[2,1,128], index: 2, kind: output, shape index: {}]
  %s3 = sld [smem:[#allocation0]]
  $region53: #{_nmd_forward.1} parent=0
    _
  %s5 = ssub.s32 1, %s3
  %s6 = scalar_select 0, %s5, %s3
  loop: start=0, step=1, limit=4
  $region2: #{_nmd_forward.1} parent=0 // loop_pre_header
    _
  $region3: #{_nmd_forward.1} parent=0 // loop_header
    %s8 = sphi 0, %s12
    %p9 = scmp.ge.s32.totalorder %s8, 4
    %s15 = sphi 0, %s34
    %s16 = sphi 0, %s30
    %s17 = sphi 0, %s26
    %s18 = sphi 0, %s15
    %s19 = sphi 0, %s16
    %s20 = sphi 0, %s17
    %s21 = sphi 0, %s18
    %s22 = sphi 0, %s19
    %s23 = sphi 0, %s20
    %s39 = sphi 0, %s41
    %s42 = sphi 0, %s39
    %s43 = sphi 0, %s42
    %s59 = sphi 0, %s43
    %s71 = sphi 0, %s73
    %s74 = sphi 0, %s71
    %s75 = sphi 0, %s74
    %s91 = sphi 0, %s75
    %s99 = sphi 0, %s101
    %s102 = sphi 0, %s99
    %s103 = sphi 0, %s102
    %s119 = sphi 0, %s103
  $region4: #{_nmd_forward.1} parent=0 // loop_header_branch
    %11 = sbr.rel (%p9) target = $region8
  $region5: #{_nmd_forward.1} parent=0 // loop_body
    %s13 = ssub.s32 %s8, 1
    %s14 = ssub.s32 %s8, 2
    %s24 = sadd.s32 1, %s17
    %p25 = scmp.ge.s32.totalorder %s24, 1
    %s26 = scalar_select %p25, 0, %s24
    %s27 = sadd.s32 1, %s16
    %s28 = scalar_select %p25, %s27, %s16
    %p29 = scmp.ge.s32.totalorder %s28, 1
    %s30 = scalar_select %p29, 0, %s28
    %s31 = sadd.s32 1, %s15
    %s32 = scalar_select %p29, %s31, %s15
    %p33 = scmp.ge.s32.totalorder %s32, 2
    %s34 = scalar_select %p33, 0, %s32
    %s35 = ssub.s32 %s15, %s34
    %s36 = ssub.s32 %s16, %s30
    %s37 = sor.u32 %s35, %s36
    %p38 = scmp.eq.s32.totalorder %s37, 0
    %s40 = sadd.s32 %s39, 1
    %s41 = scalar_select %p38, %s39, %s40
    %p44 = pneg %p38
    %p45 = scmp.eq.s32.totalorder %s8, 1
    %p46 = por %p44, %p45
    %p47 = scmp.ne.s32.totalorder %s39, %s42
    %p48 = scmp.eq.s32.totalorder %s8, 0
    %p49 = por %p47, %p48
    %p50 = scmp.ne.s32.totalorder %s39, %s42
    %p51 = scmp.eq.s32.totalorder %s13, 1
    %p52 = por %p50, %p51
    %p53 = scmp.ne.s32.totalorder %s42, %s43
    %p54 = scmp.eq.s32.totalorder %s13, 0
    %p55 = por %p53, %p54
    %p56 = scmp.ne.s32.totalorder %s42, %s43
    %p57 = scmp.eq.s32.totalorder %s14, 1
    %p58 = por %p56, %p57
    %p60 = scmp.ne.s32.totalorder %s43, %s59
    %p61 = scmp.eq.s32.totalorder %s14, 0
    %p62 = por %p60, %p61
    %p63 = scmp.lt.s32.totalorder %s17, %s16
    %s64 = scalar_select %p63, %s17, %s16
    %p65 = scmp.lt.s32.totalorder %s26, %s30
    %s66 = scalar_select %p65, %s26, %s30
    %s67 = ssub.s32 %s15, %s34
    %s68 = ssub.s32 %s64, %s66
    %s69 = sor.u32 %s67, %s68
    %p70 = scmp.eq.s32.totalorder %s69, 0
    %s72 = sadd.s32 %s71, 1
    %s73 = scalar_select %p70, %s71, %s72
    %p76 = pneg %p70
    %p77 = scmp.eq.s32.totalorder %s8, 1
    %p78 = por %p76, %p77
    %p79 = scmp.ne.s32.totalorder %s71, %s74
    %p80 = scmp.eq.s32.totalorder %s8, 0
    %p81 = por %p79, %p80
    %p82 = scmp.ne.s32.totalorder %s71, %s74
    %p83 = scmp.eq.s32.totalorder %s13, 1
    %p84 = por %p82, %p83
    %p85 = scmp.ne.s32.totalorder %s74, %s75
    %p86 = scmp.eq.s32.totalorder %s13, 0
    %p87 = por %p85, %p86
    %p88 = scmp.ne.s32.totalorder %s74, %s75
    %p89 = scmp.eq.s32.totalorder %s14, 1
    %p90 = por %p88, %p89
    %p92 = scmp.ne.s32.totalorder %s75, %s91
    %p93 = scmp.eq.s32.totalorder %s14, 0
    %p94 = por %p92, %p93
    %s95 = ssub.s32 %s15, %s34
    %s96 = ssub.s32 %s16, %s30
    %s97 = sor.u32 %s95, %s96
    %p98 = scmp.eq.s32.totalorder %s97, 0
    %s100 = sadd.s32 %s99, 1
    %s101 = scalar_select %p98, %s99, %s100
    %p104 = pneg %p98
    %p105 = scmp.eq.s32.totalorder %s8, 1
    %p106 = por %p104, %p105
    %p107 = scmp.ne.s32.totalorder %s99, %s102
    %p108 = scmp.eq.s32.totalorder %s8, 0
    %p109 = por %p107, %p108
    %p110 = scmp.ne.s32.totalorder %s99, %s102
    %p111 = scmp.eq.s32.totalorder %s13, 1
    %p112 = por %p110, %p111
    %p113 = scmp.ne.s32.totalorder %s102, %s103
    %p114 = scmp.eq.s32.totalorder %s13, 0
    %p115 = por %p113, %p114
    %p116 = scmp.ne.s32.totalorder %s102, %s103
    %p117 = scmp.eq.s32.totalorder %s14, 1
    %p118 = por %p116, %p117
    %p120 = scmp.ne.s32.totalorder %s103, %s119
    %p121 = scmp.eq.s32.totalorder %s14, 0
    %p122 = por %p120, %p121
    %p123 = scmp.le.s32.totalorder 1, %s8
    %p124 = scmp.lt.s32.totalorder %s8, 3
    %p125 = pnand %p123, %p124
    %p126 = pneg %p125
    // Predicated region
    $region9: #{_nmd_forward.1} parent=5 // pred_check
      _
    $region10: #{_nmd_forward.1} parent=5 // pred_check_branch
      %128 = sbr.rel (%p125) target = $region12
    $region11: #{_nmd_forward.1} parent=5 // pred_region
      %s129 = ssub.s32 %s8, 1
    $region12: #{_nmd_forward.1} parent=5 // pred_fallthru
      _
    %p130 = scmp.lt.s32.totalorder %s8, 2
    // Predicated region
    $region13: #{_nmd_forward.1} parent=5 // pred_check
      %p131 = pneg %p130
    $region14: #{_nmd_forward.1} parent=5 // pred_check_branch
      %133 = sbr.rel (%p131) target = $region16
    $region15: #{_nmd_forward.1} parent=5 // pred_region
      // Predicated region
      $region17: #{_nmd_forward.1} parent=15 // pred_check
        %p134 = pneg %p49
      $region18: #{_nmd_forward.1} parent=15 // pred_check_branch
        %136 = sbr.rel (%p134) target = $region20
      $region19: #{_nmd_forward.1} parent=15 // pred_region
        %p137 = scmp.lt.s32.totalorder %s15, 1
        %s138 = scalar_select %p137, %s15, 1
        %p139 = scmp.lt.s32.totalorder %s16, 0
        %s140 = scalar_select %p139, %s16, 0
        %s141 = sadd.s32 %s140, %s138
        %s142 = smul.addr %s141, 4
        %s143 = scalar_lea.vmem %s0, %s142
      $region20: #{_nmd_forward.1} parent=15 // pred_fallthru
        _
      // Predicated region
      $region21: #{_nmd_forward.1} parent=15 // pred_check
        %p144 = pneg %p81
      $region22: #{_nmd_forward.1} parent=15 // pred_check_branch
        %146 = sbr.rel (%p144) target = $region24
      $region23: #{_nmd_forward.1} parent=15 // pred_region
        %p147 = scmp.lt.s32.totalorder %s17, %s16
        %s148 = scalar_select %p147, %s17, %s16
        %s149 = smul.u32 16, %s148
        %p150 = scmp.lt.s32.totalorder %s15, 1
        %s151 = scalar_select %p150, %s15, 1
        %p152 = scmp.lt.s32.totalorder %s149, 15
        %s153 = scalar_select %p152, %s149, 15
        %s154 = smul.addr %s151, 16
        %s155 = sadd.s32 %s153, %s154
        %s156 = smul.addr %s155, 8
        %s157 = scalar_lea.vmem %s1, %s156
        %p158 = scmp.lt.s32.totalorder %s17, %s16
        %s159 = scalar_select %p158, %s17, %s16
        %s160 = smul.u32 16, %s159
      $region24: #{_nmd_forward.1} parent=15 // pred_fallthru
        _
    $region16: #{_nmd_forward.1} parent=5 // pred_fallthru
      _
    %p161 = scmp.le.s32.totalorder 1, %s8
    %p162 = scmp.lt.s32.totalorder %s8, 3
    %p163 = pnand %p161, %p162
    %p164 = pneg %p163
    // Predicated region
    $region25: #{_nmd_forward.1} parent=5 // pred_check
      _
    $region26: #{_nmd_forward.1} parent=5 // pred_check_branch
      %166 = sbr.rel (%p163) target = $region28
    $region27: #{_nmd_forward.1} parent=5 // pred_region
      %s167 = ssub.s32 %s8, 1
      %p168 = scmp.lt.s32.totalorder %s18, 1
      %s169 = scalar_select %p168, %s18, 1
      %p170 = scmp.lt.s32.totalorder %s19, 0
      %s171 = scalar_select %p170, %s19, 0
      %s172 = sadd.s32 %s171, %s169
      %s173 = smul.addr %s172, 4
      %s174 = scalar_lea.vmem %s0, %s173
      %p175 = pneg %p55
      %p176 = pneg %p52
      %p177 = scmp.lt.s32.totalorder %s20, %s19
      %s178 = scalar_select %p177, %s20, %s19
      %s179 = smul.u32 16, %s178
      %p180 = scmp.lt.s32.totalorder %s18, 1
      %s181 = scalar_select %p180, %s18, 1
      %p182 = scmp.lt.s32.totalorder %s179, 15
      %s183 = scalar_select %p182, %s179, 15
      %s184 = smul.addr %s181, 16
      %s185 = sadd.s32 %s183, %s184
      %s186 = smul.addr %s185, 8
      %s187 = scalar_lea.vmem %s1, %s186
      %p188 = pneg %p87
      %p189 = pneg %p84
      %p190 = pneg %p115
      %p191 = pneg %p112
      %p192 = scmp.lt.s32.totalorder %s18, 1
      %s193 = scalar_select %p192, %s18, 1
      %p194 = scmp.lt.s32.totalorder %s19, 0
      %s195 = scalar_select %p194, %s19, 0
      %s196 = sadd.s32 %s195, %s193
      %s197 = scalar_lea.vmem %s2, %s196
      %p198 = scmp.lt.s32.totalorder %s18, 1
      %s199 = scalar_select %p198, %s18, 1
      %p200 = scmp.lt.s32.totalorder %s19, 0
      %s201 = scalar_select %p200, %s19, 0
      %s202 = sadd.s32 %s201, %s199
      %s203 = smul.addr %s202, 4
      %s204 = scalar_lea.vmem %s0, %s203
      %p205 = scmp.lt.s32.totalorder %s20, %s19
      %s206 = scalar_select %p205, %s20, %s19
      %s207 = smul.u32 16, %s206
      %p208 = scmp.lt.s32.totalorder %s18, 1
      %s209 = scalar_select %p208, %s18, 1
      %p210 = scmp.lt.s32.totalorder %s207, 15
      %s211 = scalar_select %p210, %s207, 15
      %s212 = smul.addr %s209, 16
      %s213 = sadd.s32 %s211, %s212
      %s214 = smul.addr %s213, 8
      %s215 = scalar_lea.vmem %s1, %s214
      %p216 = scmp.lt.s32.totalorder %s20, %s19
      %s217 = scalar_select %p216, %s20, %s19
      %s218 = smul.u32 16, %s217
      %p219 = scmp.lt.s32.totalorder %s18, 1
      %s220 = scalar_select %p219, %s18, 1
      %p221 = scmp.lt.s32.totalorder %s19, 0
      %s222 = scalar_select %p221, %s19, 0
      %s223 = sadd.s32 %s222, %s220
      %s224 = scalar_lea.vmem %s2, %s223
      %p225 = scmp.eq.s32.totalorder %s20, 0
      // Predicated region
      $region29: #{_nmd_forward.1} parent=27 // pred_check
        %p226 = pneg %p225
      $region30: #{_nmd_forward.1} parent=27 // pred_check_branch
        %228 = sbr.rel (%p226) target = $region32
      $region31: #{_nmd_forward.1} parent=27 // pred_region
        %229 = vst [vmem:[#allocation2] sm:$0x1] 16
      $region32: #{_nmd_forward.1} parent=27 // pred_fallthru
        _
      %p230 = scmp.le.s32.totalorder %s20, %s19
      // Predicated region
      $region33: #{_nmd_forward.1} parent=27 // pred_check
        %p231 = pneg %p230
      $region34: #{_nmd_forward.1} parent=27 // pred_check_branch
        %233 = sbr.rel (%p231) target = $region36
      $region35: #{_nmd_forward.1} parent=27 // pred_region
        %v234 = vld [vmem:[%s204] sm:$0x7]
        %v235 = vld [vmem:[%s215] sm:$0xff]
        %v236 = vld [vmem:[%s215 + $0x8] sm:$0xff]
        %v237 = vld [vmem:[%s215 + $0x10] sm:$0xff]
        %v238 = vld [vmem:[%s215 + $0x18] sm:$0xff]
        %v239 = vld [vmem:[%s215 + $0x20] sm:$0xff]
        %v240 = vld [vmem:[%s215 + $0x28] sm:$0xff]
        %v241 = vld [vmem:[%s215 + $0x30] sm:$0xff]
        %v242 = vld [vmem:[%s215 + $0x38] sm:$0xff]
        %v243 = vld [vmem:[%s215 + $0x40] sm:$0xff]
        %v244 = vld [vmem:[%s215 + $0x48] sm:$0xff]
        %v245 = vld [vmem:[%s215 + $0x50] sm:$0xff]
        %v246 = vld [vmem:[%s215 + $0x58] sm:$0xff]
        %v247 = vld [vmem:[%s215 + $0x60] sm:$0xff]
        %v248 = vld [vmem:[%s215 + $0x68] sm:$0xff]
        %v249 = vld [vmem:[%s215 + $0x70] sm:$0xff]
        %v250 = vld [vmem:[%s215 + $0x78] sm:$0xff]
        %252 = vset.pattern.permute.xlu0 0
        %253 = vperm.xlu0 %252, %v235
        %v254 = vpop.permute.xlu0 %253
        %257 = vset.pattern.permute.xlu0 0
        %258 = vperm.xlu0 %257, %v236
        %v259 = vpop.permute.xlu0 %258
        %262 = vset.pattern.permute.xlu0 0
        %263 = vperm.xlu0 %262, %v237
        %v264 = vpop.permute.xlu0 %263
        %267 = vset.pattern.permute.xlu0 0
        %268 = vperm.xlu0 %267, %v238
        %v269 = vpop.permute.xlu0 %268
        %272 = vset.pattern.permute.xlu0 0
        %273 = vperm.xlu0 %272, %v239
        %v274 = vpop.permute.xlu0 %273
        %277 = vset.pattern.permute.xlu0 0
        %278 = vperm.xlu0 %277, %v240
        %v279 = vpop.permute.xlu0 %278
        %282 = vset.pattern.permute.xlu0 0
        %283 = vperm.xlu0 %282, %v241
        %v284 = vpop.permute.xlu0 %283
        %287 = vset.pattern.permute.xlu0 0
        %288 = vperm.xlu0 %287, %v242
        %v289 = vpop.permute.xlu0 %288
        %292 = vset.pattern.permute.xlu0 0
        %293 = vperm.xlu0 %292, %v243
        %v294 = vpop.permute.xlu0 %293
        %297 = vset.pattern.permute.xlu0 0
        %298 = vperm.xlu0 %297, %v244
        %v299 = vpop.permute.xlu0 %298
        %302 = vset.pattern.permute.xlu0 0
        %303 = vperm.xlu0 %302, %v245
        %v304 = vpop.permute.xlu0 %303
        %307 = vset.pattern.permute.xlu0 0
        %308 = vperm.xlu0 %307, %v246
        %v309 = vpop.permute.xlu0 %308
        %312 = vset.pattern.permute.xlu0 0
        %313 = vperm.xlu0 %312, %v247
        %v314 = vpop.permute.xlu0 %313
        %317 = vset.pattern.permute.xlu0 0
        %318 = vperm.xlu0 %317, %v248
        %v319 = vpop.permute.xlu0 %318
        %322 = vset.pattern.permute.xlu0 0
        %323 = vperm.xlu0 %322, %v249
        %v324 = vpop.permute.xlu0 %323
        %327 = vset.pattern.permute.xlu0 0
        %328 = vperm.xlu0 %327, %v250
        %v329 = vpop.permute.xlu0 %328
        %v331 = vlaneseq
        %v332 = vshrl.u32 %v331, 7
        %v333 = vsub.s32 0, %v332
        %v334 = vrot.slane %v234, %v333
        %v335 = vsub.f32 %v254, %v334
        %v336 = vsub.f32 %v259, %v334
        %v337 = vsub.f32 %v264, %v334
        %v338 = vsub.f32 %v269, %v334
        %v339 = vsub.f32 %v274, %v334
        %v340 = vsub.f32 %v279, %v334
        %v341 = vsub.f32 %v284, %v334
        %v342 = vsub.f32 %v289, %v334
        %v343 = vsub.f32 %v294, %v334
        %v344 = vsub.f32 %v299, %v334
        %v345 = vsub.f32 %v304, %v334
        %v346 = vsub.f32 %v309, %v334
        %v347 = vsub.f32 %v314, %v334
        %v348 = vsub.f32 %v319, %v334
        %v349 = vsub.f32 %v324, %v334
        %v350 = vsub.f32 %v329, %v334
        %351 = vset.pattern.permute.xlu0 1
        %352 = vperm.xlu0 %351, %v235
        %v353 = vpop.permute.xlu0 %352
        %355 = vset.pattern.permute.xlu0 1
        %356 = vperm.xlu0 %355, %v236
        %v357 = vpop.permute.xlu0 %356
        %359 = vset.pattern.permute.xlu0 1
        %360 = vperm.xlu0 %359, %v237
        %v361 = vpop.permute.xlu0 %360
        %363 = vset.pattern.permute.xlu0 1
        %364 = vperm.xlu0 %363, %v238
        %v365 = vpop.permute.xlu0 %364
        %367 = vset.pattern.permute.xlu0 1
        %368 = vperm.xlu0 %367, %v239
        %v369 = vpop.permute.xlu0 %368
        %371 = vset.pattern.permute.xlu0 1
        %372 = vperm.xlu0 %371, %v240
        %v373 = vpop.permute.xlu0 %372
        %375 = vset.pattern.permute.xlu0 1
        %376 = vperm.xlu0 %375, %v241
        %v377 = vpop.permute.xlu0 %376
        %379 = vset.pattern.permute.xlu0 1
        %380 = vperm.xlu0 %379, %v242
        %v381 = vpop.permute.xlu0 %380
        %383 = vset.pattern.permute.xlu0 1
        %384 = vperm.xlu0 %383, %v243
        %v385 = vpop.permute.xlu0 %384
        %387 = vset.pattern.permute.xlu0 1
        %388 = vperm.xlu0 %387, %v244
        %v389 = vpop.permute.xlu0 %388
        %391 = vset.pattern.permute.xlu0 1
        %392 = vperm.xlu0 %391, %v245
        %v393 = vpop.permute.xlu0 %392
        %395 = vset.pattern.permute.xlu0 1
        %396 = vperm.xlu0 %395, %v246
        %v397 = vpop.permute.xlu0 %396
        %399 = vset.pattern.permute.xlu0 1
        %400 = vperm.xlu0 %399, %v247
        %v401 = vpop.permute.xlu0 %400
        %403 = vset.pattern.permute.xlu0 1
        %404 = vperm.xlu0 %403, %v248
        %v405 = vpop.permute.xlu0 %404
        %407 = vset.pattern.permute.xlu0 1
        %408 = vperm.xlu0 %407, %v249
        %v409 = vpop.permute.xlu0 %408
        %411 = vset.pattern.permute.xlu0 1
        %412 = vperm.xlu0 %411, %v250
        %v413 = vpop.permute.xlu0 %412
        %v415 = vlaneseq
        %v416 = vshrl.u32 %v415, 7
        %v417 = vsub.s32 1, %v416
        %v418 = vrot.slane %v234, %v417
        %v419 = vsub.f32 %v353, %v418
        %v420 = vsub.f32 %v357, %v418
        %v421 = vsub.f32 %v361, %v418
        %v422 = vsub.f32 %v365, %v418
        %v423 = vsub.f32 %v369, %v418
        %v424 = vsub.f32 %v373, %v418
        %v425 = vsub.f32 %v377, %v418
        %v426 = vsub.f32 %v381, %v418
        %v427 = vsub.f32 %v385, %v418
        %v428 = vsub.f32 %v389, %v418
        %v429 = vsub.f32 %v393, %v418
        %v430 = vsub.f32 %v397, %v418
        %v431 = vsub.f32 %v401, %v418
        %v432 = vsub.f32 %v405, %v418
        %v433 = vsub.f32 %v409, %v418
        %v434 = vsub.f32 %v413, %v418
        %435 = vset.pattern.permute.xlu0 2
        %436 = vperm.xlu0 %435, %v235
        %v437 = vpop.permute.xlu0 %436
        %439 = vset.pattern.permute.xlu0 2
        %440 = vperm.xlu0 %439, %v236
        %v441 = vpop.permute.xlu0 %440
        %443 = vset.pattern.permute.xlu0 2
        %444 = vperm.xlu0 %443, %v237
        %v445 = vpop.permute.xlu0 %444
        %447 = vset.pattern.permute.xlu0 2
        %448 = vperm.xlu0 %447, %v238
        %v449 = vpop.permute.xlu0 %448
        %451 = vset.pattern.permute.xlu0 2
        %452 = vperm.xlu0 %451, %v239
        %v453 = vpop.permute.xlu0 %452
        %455 = vset.pattern.permute.xlu0 2
        %456 = vperm.xlu0 %455, %v240
        %v457 = vpop.permute.xlu0 %456
        %459 = vset.pattern.permute.xlu0 2
        %460 = vperm.xlu0 %459, %v241
        %v461 = vpop.permute.xlu0 %460
        %463 = vset.pattern.permute.xlu0 2
        %464 = vperm.xlu0 %463, %v242
        %v465 = vpop.permute.xlu0 %464
        %467 = vset.pattern.permute.xlu0 2
        %468 = vperm.xlu0 %467, %v243
        %v469 = vpop.permute.xlu0 %468
        %471 = vset.pattern.permute.xlu0 2
        %472 = vperm.xlu0 %471, %v244
        %v473 = vpop.permute.xlu0 %472
        %475 = vset.pattern.permute.xlu0 2
        %476 = vperm.xlu0 %475, %v245
        %v477 = vpop.permute.xlu0 %476
        %479 = vset.pattern.permute.xlu0 2
        %480 = vperm.xlu0 %479, %v246
        %v481 = vpop.permute.xlu0 %480
        %483 = vset.pattern.permute.xlu0 2
        %484 = vperm.xlu0 %483, %v247
        %v485 = vpop.permute.xlu0 %484
        %487 = vset.pattern.permute.xlu0 2
        %488 = vperm.xlu0 %487, %v248
        %v489 = vpop.permute.xlu0 %488
        %491 = vset.pattern.permute.xlu0 2
        %492 = vperm.xlu0 %491, %v249
        %v493 = vpop.permute.xlu0 %492
        %495 = vset.pattern.permute.xlu0 2
        %496 = vperm.xlu0 %495, %v250
        %v497 = vpop.permute.xlu0 %496
        %v499 = vlaneseq
        %v500 = vshrl.u32 %v499, 7
        %v501 = vsub.s32 2, %v500
        %v502 = vrot.slane %v234, %v501
        %v503 = vsub.f32 %v437, %v502
        %v504 = vsub.f32 %v441, %v502
        %v505 = vsub.f32 %v445, %v502
        %v506 = vsub.f32 %v449, %v502
        %v507 = vsub.f32 %v453, %v502
        %v508 = vsub.f32 %v457, %v502
        %v509 = vsub.f32 %v461, %v502
        %v510 = vsub.f32 %v465, %v502
        %v511 = vsub.f32 %v469, %v502
        %v512 = vsub.f32 %v473, %v502
        %v513 = vsub.f32 %v477, %v502
        %v514 = vsub.f32 %v481, %v502
        %v515 = vsub.f32 %v485, %v502
        %v516 = vsub.f32 %v489, %v502
        %v517 = vsub.f32 %v493, %v502
        %v518 = vsub.f32 %v497, %v502
        %v519 = vmul.f32 %v335, %v335
        %v520 = vmul.f32 %v336, %v336
        %v521 = vmul.f32 %v337, %v337
        %v522 = vmul.f32 %v338, %v338
        %v523 = vmul.f32 %v339, %v339
        %v524 = vmul.f32 %v340, %v340
        %v525 = vmul.f32 %v341, %v341
        %v526 = vmul.f32 %v342, %v342
        %v527 = vmul.f32 %v343, %v343
        %v528 = vmul.f32 %v344, %v344
        %v529 = vmul.f32 %v345, %v345
        %v530 = vmul.f32 %v346, %v346
        %v531 = vmul.f32 %v347, %v347
        %v532 = vmul.f32 %v348, %v348
        %v533 = vmul.f32 %v349, %v349
        %v534 = vmul.f32 %v350, %v350
        %v535 = vmul.f32 %v419, %v419
        %v536 = vmul.f32 %v420, %v420
        %v537 = vmul.f32 %v421, %v421
        %v538 = vmul.f32 %v422, %v422
        %v539 = vmul.f32 %v423, %v423
        %v540 = vmul.f32 %v424, %v424
        %v541 = vmul.f32 %v425, %v425
        %v542 = vmul.f32 %v426, %v426
        %v543 = vmul.f32 %v427, %v427
        %v544 = vmul.f32 %v428, %v428
        %v545 = vmul.f32 %v429, %v429
        %v546 = vmul.f32 %v430, %v430
        %v547 = vmul.f32 %v431, %v431
        %v548 = vmul.f32 %v432, %v432
        %v549 = vmul.f32 %v433, %v433
        %v550 = vmul.f32 %v434, %v434
        %v551 = vadd.f32 %v519, %v535
        %v552 = vadd.f32 %v520, %v536
        %v553 = vadd.f32 %v521, %v537
        %v554 = vadd.f32 %v522, %v538
        %v555 = vadd.f32 %v523, %v539
        %v556 = vadd.f32 %v524, %v540
        %v557 = vadd.f32 %v525, %v541
        %v558 = vadd.f32 %v526, %v542
        %v559 = vadd.f32 %v527, %v543
        %v560 = vadd.f32 %v528, %v544
        %v561 = vadd.f32 %v529, %v545
        %v562 = vadd.f32 %v530, %v546
        %v563 = vadd.f32 %v531, %v547
        %v564 = vadd.f32 %v532, %v548
        %v565 = vadd.f32 %v533, %v549
        %v566 = vadd.f32 %v534, %v550
        %v567 = vmul.f32 %v503, %v503
        %v568 = vmul.f32 %v504, %v504
        %v569 = vmul.f32 %v505, %v505
        %v570 = vmul.f32 %v506, %v506
        %v571 = vmul.f32 %v507, %v507
        %v572 = vmul.f32 %v508, %v508
        %v573 = vmul.f32 %v509, %v509
        %v574 = vmul.f32 %v510, %v510
        %v575 = vmul.f32 %v511, %v511
        %v576 = vmul.f32 %v512, %v512
        %v577 = vmul.f32 %v513, %v513
        %v578 = vmul.f32 %v514, %v514
        %v579 = vmul.f32 %v515, %v515
        %v580 = vmul.f32 %v516, %v516
        %v581 = vmul.f32 %v517, %v517
        %v582 = vmul.f32 %v518, %v518
        %v583 = vadd.f32 %v551, %v567
        %v584 = vadd.f32 %v552, %v568
        %v585 = vadd.f32 %v553, %v569
        %v586 = vadd.f32 %v554, %v570
        %v587 = vadd.f32 %v555, %v571
        %v588 = vadd.f32 %v556, %v572
        %v589 = vadd.f32 %v557, %v573
        %v590 = vadd.f32 %v558, %v574
        %v591 = vadd.f32 %v559, %v575
        %v592 = vadd.f32 %v560, %v576
        %v593 = vadd.f32 %v561, %v577
        %v594 = vadd.f32 %v562, %v578
        %v595 = vadd.f32 %v563, %v579
        %v596 = vadd.f32 %v564, %v580
        %v597 = vadd.f32 %v565, %v581
        %v598 = vadd.f32 %v566, %v582
        %v599 = vlaneseq
        %v600 = vshrl.u32 %v599, 7
        %v601 = vadd.s32 %v600, 8
        %v602 = vadd.s32 %v600, 16
        %v603 = vadd.s32 %v600, 24
        %v604 = vadd.s32 %v600, 32
        %v605 = vadd.s32 %v600, 40
        %v606 = vadd.s32 %v600, 48
        %v607 = vadd.s32 %v600, 56
        %v608 = vadd.s32 %v600, 64
        %v609 = vadd.s32 %v600, 72
        %v610 = vadd.s32 %v600, 80
        %v611 = vadd.s32 %v600, 88
        %v612 = vadd.s32 %v600, 96
        %v613 = vadd.s32 %v600, 104
        %v614 = vadd.s32 %v600, 112
        %v615 = vadd.s32 %v600, 120
        %s616 = smul.u32 %s20, 128
        %v617 = vstv %s616
        %v618 = vadd.s32 %v600, %v617
        %v619 = vadd.s32 %v601, %v617
        %v620 = vadd.s32 %v602, %v617
        %v621 = vadd.s32 %v603, %v617
        %v622 = vadd.s32 %v604, %v617
        %v623 = vadd.s32 %v605, %v617
        %v624 = vadd.s32 %v606, %v617
        %v625 = vadd.s32 %v607, %v617
        %v626 = vadd.s32 %v608, %v617
        %v627 = vadd.s32 %v609, %v617
        %v628 = vadd.s32 %v610, %v617
        %v629 = vadd.s32 %v611, %v617
        %v630 = vadd.s32 %v612, %v617
        %v631 = vadd.s32 %v613, %v617
        %v632 = vadd.s32 %v614, %v617
        %v633 = vadd.s32 %v615, %v617
        %vm634 = vcmp.lt.f32.partialorder %v583, 1.0
        %vm635 = vcmp.lt.f32.partialorder %v584, 1.0
        %vm636 = vcmp.lt.f32.partialorder %v585, 1.0
        %vm637 = vcmp.lt.f32.partialorder %v586, 1.0
        %vm638 = vcmp.lt.f32.partialorder %v587, 1.0
        %vm639 = vcmp.lt.f32.partialorder %v588, 1.0
        %vm640 = vcmp.lt.f32.partialorder %v589, 1.0
        %vm641 = vcmp.lt.f32.partialorder %v590, 1.0
        %vm642 = vcmp.lt.f32.partialorder %v591, 1.0
        %vm643 = vcmp.lt.f32.partialorder %v592, 1.0
        %vm644 = vcmp.lt.f32.partialorder %v593, 1.0
        %vm645 = vcmp.lt.f32.partialorder %v594, 1.0
        %vm646 = vcmp.lt.f32.partialorder %v595, 1.0
        %vm647 = vcmp.lt.f32.partialorder %v596, 1.0
        %vm648 = vcmp.lt.f32.partialorder %v597, 1.0
        %vm649 = vcmp.lt.f32.partialorder %v598, 1.0
        %v650 = vsel %vm634, %v618, 16
        %v651 = vsel %vm635, %v619, 16
        %v652 = vsel %vm636, %v620, 16
        %v653 = vsel %vm637, %v621, 16
        %v654 = vsel %vm638, %v622, 16
        %v655 = vsel %vm639, %v623, 16
        %v656 = vsel %vm640, %v624, 16
        %v657 = vsel %vm641, %v625, 16
        %v658 = vsel %vm642, %v626, 16
        %v659 = vsel %vm643, %v627, 16
        %v660 = vsel %vm644, %v628, 16
        %v661 = vsel %vm645, %v629, 16
        %v662 = vsel %vm646, %v630, 16
        %v663 = vsel %vm647, %v631, 16
        %v664 = vsel %vm648, %v632, 16
        %v665 = vsel %vm649, %v633, 16
        %v666 = vld [vmem:[#allocation2] sm:$0x1]
        %vm667 = vcmp.lt.s32.totalorder %v650, %v654
        %v668 = vsel %vm667, %v650, %v654
        %vm669 = vcmp.lt.s32.totalorder %v651, %v655
        %v670 = vsel %vm669, %v651, %v655
        %vm671 = vcmp.lt.s32.totalorder %v652, %v656
        %v672 = vsel %vm671, %v652, %v656
        %vm673 = vcmp.lt.s32.totalorder %v653, %v657
        %v674 = vsel %vm673, %v653, %v657
        %vm675 = vcmp.lt.s32.totalorder %v668, %v658
        %v676 = vsel %vm675, %v668, %v658
        %vm677 = vcmp.lt.s32.totalorder %v670, %v659
        %v678 = vsel %vm677, %v670, %v659
        %vm679 = vcmp.lt.s32.totalorder %v672, %v660
        %v680 = vsel %vm679, %v672, %v660
        %vm681 = vcmp.lt.s32.totalorder %v674, %v661
        %v682 = vsel %vm681, %v674, %v661
        %vm683 = vcmp.lt.s32.totalorder %v676, %v662
        %v684 = vsel %vm683, %v676, %v662
        %vm685 = vcmp.lt.s32.totalorder %v678, %v663
        %v686 = vsel %vm685, %v678, %v663
        %vm687 = vcmp.lt.s32.totalorder %v680, %v664
        %v688 = vsel %vm687, %v680, %v664
        %vm689 = vcmp.lt.s32.totalorder %v682, %v665
        %v690 = vsel %vm689, %v682, %v665
        %vm691 = vcmp.lt.s32.totalorder %v684, %v686
        %v692 = vsel %vm691, %v684, %v686
        %vm693 = vcmp.lt.s32.totalorder %v688, %v690
        %v694 = vsel %vm693, %v688, %v690
        %vm695 = vcmp.lt.s32.totalorder %v692, %v694
        %v696 = vsel %vm695, %v692, %v694
        %v697 = vrot.slane %v696, 4
        %vm698 = vcmp.lt.s32.totalorder %v696, %v697
        %v699 = vsel %vm698, %v696, %v697
        %v700 = vrot.slane %v699, 2
        %vm701 = vcmp.lt.s32.totalorder %v699, %v700
        %v702 = vsel %vm701, %v699, %v700
        %v703 = vrot.slane %v702, 1
        %vm704 = vcmp.lt.s32.totalorder %v702, %v703
        %v705 = vsel %vm704, %v702, %v703
        %vm706 = vcmp.lt.s32.totalorder %v666, %v705
        %v707 = vsel %vm706, %v666, %v705
        %708 = vst [vmem:[#allocation2] sm:$0x1] %v707
      $region36: #{_nmd_forward.1} parent=27 // pred_fallthru
        _
      // Predicated region
      $region37: #{_nmd_forward.1} parent=27 // pred_check
        %p709 = pneg %p225
      $region38: #{_nmd_forward.1} parent=27 // pred_check_branch
        %711 = sbr.rel (%p709) target = $region40
      $region39: #{_nmd_forward.1} parent=27 // pred_region
        %v712 = vld [vmem:[#allocation2] sm:$0x1]
        %713 = vst [vmem:[%s224] sm:$0x1] %v712
      $region40: #{_nmd_forward.1} parent=27 // pred_fallthru
        _
      %p714 = scmp.lt.s32.totalorder %s18, 1
      %s715 = scalar_select %p714, %s18, 1
      %p716 = scmp.lt.s32.totalorder %s19, 0
      %s717 = scalar_select %p716, %s19, 0
      %s718 = sadd.s32 %s717, %s715
      %s719 = scalar_lea.vmem %s2, %s718
      // Predicated region
      $region41: #{_nmd_forward.1} parent=27 // pred_check
        %p720 = pneg %p112
      $region42: #{_nmd_forward.1} parent=27 // pred_check_branch
        %722 = sbr.rel (%p720) target = $region44
      $region43: #{_nmd_forward.1} parent=27 // pred_region
        _
      $region44: #{_nmd_forward.1} parent=27 // pred_fallthru
        _
    $region28: #{_nmd_forward.1} parent=5 // pred_fallthru
      _
    %p723 = scmp.le.s32.totalorder 2, %s8
    // Predicated region
    $region45: #{_nmd_forward.1} parent=5 // pred_check
      %p724 = pneg %p723
    $region46: #{_nmd_forward.1} parent=5 // pred_check_branch
      %726 = sbr.rel (%p724) target = $region48
    $region47: #{_nmd_forward.1} parent=5 // pred_region
      %s727 = ssub.s32 %s8, 2
      // Predicated region
      $region49: #{_nmd_forward.1} parent=47 // pred_check
        %p728 = pneg %p118
      $region50: #{_nmd_forward.1} parent=47 // pred_check_branch
        %730 = sbr.rel (%p728) target = $region52
      $region51: #{_nmd_forward.1} parent=47 // pred_region
        %p731 = scmp.lt.s32.totalorder %s21, 1
        %s732 = scalar_select %p731, %s21, 1
        %p733 = scmp.lt.s32.totalorder %s22, 0
        %s734 = scalar_select %p733, %s22, 0
        %s735 = sadd.s32 %s734, %s732
        %s736 = scalar_lea.vmem %s2, %s735
      $region52: #{_nmd_forward.1} parent=47 // pred_fallthru
        _
    $region48: #{_nmd_forward.1} parent=5 // pred_fallthru
      _
  $region6: #{_nmd_forward.1} parent=0 // loop_footer
    %s12 = sadd.s32 1, %s8
  $region7: #{_nmd_forward.1} parent=0 // loop_footer_branch
    %7 = sbr.rel target = $region3
  $region8: #{_nmd_forward.1} parent=0 // loop_exit
    _

</llo_original>
